<compile_context>
chip_gen: v5e
topology: v5e:2x2
jax: 0.10.0
libtpu: 0.0.40
codegen_flags: <defaults>
</compile_context>

<pallas_src>
import functools
import itertools

import jax
import jax.numpy as jnp
import numpy as np
from jax.experimental import pallas as pl
from jax.experimental.pallas import tpu as pltpu


COMPUTE_DTYPE = jnp.bfloat16   # MXU operand dtype (f32 accumulation everywhere)


# ----------------------------- fused Pallas kernel -------------------------

def _fused_attn_subsample_kernel(
    x_ref,        # (N, C)          tokens for this batch element
    xs_ref,       # (N_, C)         subsampled tokens (query side)
    kv_w_ref,     # (C, H*(kd+d))
    kv_b_ref,     # (1, H*(kd+d))
    q_w_ref,      # (C, H*kd)
    q_b_ref,      # (1, H*kd)
    bias_ref,     # (H, N_, N)      precomputed relative-position bias
    proj_w_ref,   # (H*d, out_dim)
    proj_b_ref,   # (1, out_dim)
    o_ref,        # (N_, out_dim)
    *, num_heads, key_dim, d, scale,
):
    cd = COMPUTE_DTYPE
    x = x_ref[...]
    xs = xs_ref[...]

    # kv = Linear(x): (N, H*(kd+d));  q = Linear(Subsample(x)): (N_, H*kd)
    kv = jnp.dot(x.astype(cd), kv_w_ref[...].astype(cd),
                 preferred_element_type=jnp.float32) + kv_b_ref[...]
    q_all = jnp.dot(xs.astype(cd), q_w_ref[...].astype(cd),
                    preferred_element_type=jnp.float32) + q_b_ref[...]

    bias = bias_ref[...]                       # (H, N_, N), resident f32
    per_head = key_dim + d

    outs = []
    for h in range(num_heads):                 # H is small & static: unrolled
        base = h * per_head
        k_h = kv[:, base:base + key_dim]       # (N, kd)
        v_h = kv[:, base + key_dim:base + per_head]   # (N, d)
        q_h = q_all[:, h * key_dim:(h + 1) * key_dim]  # (N_, kd)

        # s = q @ k^T : contract last dims directly (no transpose materialized)
        s = jax.lax.dot_general(
            q_h.astype(cd), k_h.astype(cd),
            dimension_numbers=(((1,), (1,)), ((), ())),
            preferred_element_type=jnp.float32)
        s = s * scale + bias[h]                # (N_, N), f32

        # softmax (f32 on VPU/EUP)
        m = jnp.max(s, axis=-1, keepdims=True)
        p = jnp.exp(s - m)
        denom_inv = pl.reciprocal(jnp.sum(p, axis=-1, keepdims=True), approx=True)
        attn = p * denom_inv

        outs.append(jnp.dot(attn.astype(cd), v_h.astype(cd),
                            preferred_element_type=jnp.float32))   # (N_, d)

    # head-major concat -> lane-dense (N_, H*d) held entirely in VMEM
    o = jnp.concatenate(outs, axis=-1)

    # proj = Linear(Hardswish(o)) fused epilogue
    o = o * jnp.clip(o + 3.0, 0.0, 6.0) * (1.0 / 6.0)   # hardswish, f32
    y = jnp.dot(o.astype(cd), proj_w_ref[...].astype(cd),
                preferred_element_type=jnp.float32) + proj_b_ref[...]
    o_ref[...] = y.astype(o_ref.dtype)


# ----------------------------- wrapper --------------------------------------

def attention_subsample_forward(x, params, cfg):
    """x: (B, N, C) -> (B, N_, out_dim). Entire forward = one pallas_call."""
    B, N, C = x.shape
    H = cfg["num_heads"]
    key_dim, d, dh = cfg["key_dim"], cfg["d"], cfg["dh"]
    res, res_, stride = cfg["resolution"], cfg["resolution_"], cfg["stride"]
    out_dim = cfg["out_dim"]
    N_ = res_ * res_
    h_total = H * (key_dim + d)
    nh_kd = H * key_dim
    scale = key_dim ** (-0.5)

    # Subsample = static strided spatial slice (pure indexing glue).
    xs = x.reshape(B, res, res, C)[:, ::stride, ::stride].reshape(B, N_, C)

    kernel = functools.partial(
        _fused_attn_subsample_kernel,
        num_heads=H, key_dim=key_dim, d=d, scale=scale)

    return pl.pallas_call(
        kernel,
        grid=(B,),
        in_specs=[
            pl.BlockSpec((None, N, C), lambda b: (b, 0, 0)),       # x
            pl.BlockSpec((None, N_, C), lambda b: (b, 0, 0)),      # xs
            pl.BlockSpec((C, h_total), lambda b: (0, 0)),          # kv_w (resident)
            pl.BlockSpec((1, h_total), lambda b: (0, 0)),          # kv_b
            pl.BlockSpec((C, nh_kd), lambda b: (0, 0)),            # q_w
            pl.BlockSpec((1, nh_kd), lambda b: (0, 0)),            # q_b
            pl.BlockSpec((H, N_, N), lambda b: (0, 0, 0)),         # bias (resident)
            pl.BlockSpec((dh, out_dim), lambda b: (0, 0)),         # proj_w
            pl.BlockSpec((1, out_dim), lambda b: (0, 0)),          # proj_b
        ],
        out_specs=pl.BlockSpec((None, N_, out_dim), lambda b: (b, 0, 0)),
        out_shape=jax.ShapeDtypeStruct((B, N_, out_dim), jnp.float32),
        compiler_params=pltpu.CompilerParams(
            dimension_semantics=("parallel",)),   # batch axis shards across TCs (v7x)
    )(
        x, xs,
        params["kv_w"], params["kv_b"].reshape(1, h_total),
        params["q_w"], params["q_b"].reshape(1, nh_kd),
        params["ab"],                              # bias gather hoisted to init
        params["proj_w"], params["proj_b"].reshape(1, out_dim),
    )


# ----------------------------- reference (pure JAX, f32) --------------------

def reference_forward(x, params, cfg):
    B, N, C = x.shape
    H = cfg["num_heads"]
    key_dim, d, dh = cfg["key_dim"], cfg["d"], cfg["dh"]
    res, res_, stride = cfg["resolution"], cfg["resolution_"], cfg["stride"]
    N_ = res_ * res_
    scale = key_dim ** (-0.5)

    kv = x.reshape(B * N, C) @ params["kv_w"] + params["kv_b"]
    kv = kv.reshape(B, N, H, key_dim + d)
    k = kv[..., :key_dim].transpose(0, 2, 1, 3)
    v = kv[..., key_dim:].transpose(0, 2, 1, 3)

    xs = x.reshape(B, res, res, C)[:, ::stride, ::stride].reshape(B, N_, C)
    q = xs.reshape(B * N_, C) @ params["q_w"] + params["q_b"]
    q = q.reshape(B, N_, H, key_dim).transpose(0, 2, 1, 3)

    bias = params["attention_biases"][:, cfg["attention_bias_idxs"]]
    s = jnp.einsum("bhqd,bhkd->bhqk", q, k) * scale + bias[None]
    attn = jax.nn.softmax(s, axis=-1)
    o = jnp.einsum("bhqk,bhkd->bhqd", attn, v)
    o = o.transpose(0, 2, 1, 3).reshape(B * N_, dh)
    o = o * jnp.clip(o + 3.0, 0.0, 6.0) / 6.0
    y = o @ params["proj_w"] + params["proj_b"]
    return y.reshape(B, N_, cfg["out_dim"])


# ----------------------------- setup / main ---------------------------------

def build_bias_idxs(resolution, resolution_, stride):
    points = list(itertools.product(range(resolution), range(resolution)))
    points_ = list(itertools.product(range(resolution_), range(resolution_)))
    attention_offsets = {}
    idxs = []
    for p1 in points_:
        for p2 in points:
            size = 1
            offset = (abs(p1[0] * stride - p2[0] + (size - 1) / 2),
                      abs(p1[1] * stride - p2[1] + (size - 1) / 2))
            if offset not in attention_offsets:
                attention_offsets[offset] = len(attention_offsets)
            idxs.append(attention_offsets[offset])
    idxs = np.array(idxs, dtype=np.int32).reshape(len(points_), len(points))
    return jnp.asarray(idxs), len(attention_offsets)


if __name__ == "__main__":
    # small config consistent with the module
    B = 2
    in_dim, out_dim = 32, 32
    key_dim, num_heads, attn_ratio = 16, 4, 2
    stride, resolution, resolution_ = 2, 4, 2

    d = int(attn_ratio * key_dim)        # 32
    dh = d * num_heads                   # 128
    nh_kd = key_dim * num_heads          # 64
    h = dh + nh_kd                       # 192
    N = resolution ** 2                  # 16
    N_ = resolution_ ** 2                # 4

    bias_idxs, num_offsets = build_bias_idxs(resolution, resolution_, stride)

    cfg = dict(num_heads=num_heads, key_dim=key_dim, d=d, dh=dh,
               resolution=resolution, resolution_=resolution_, stride=stride,
               out_dim=out_dim, attention_bias_idxs=bias_idxs)

    key = jax.random.PRNGKey(0)
    ks = jax.random.split(key, 8)
    params = {
        "kv_w": jax.random.normal(ks[0], (in_dim, h), jnp.float32) * 0.05,
        "kv_b": jax.random.normal(ks[1], (h,), jnp.float32) * 0.05,
        "q_w": jax.random.normal(ks[2], (in_dim, nh_kd), jnp.float32) * 0.05,
        "q_b": jax.random.normal(ks[3], (nh_kd,), jnp.float32) * 0.05,
        "proj_w": jax.random.normal(ks[4], (dh, out_dim), jnp.float32) * 0.05,
        "proj_b": jax.random.normal(ks[5], (out_dim,), jnp.float32) * 0.05,
        "attention_biases": jax.random.normal(
            ks[6], (num_heads, num_offsets), jnp.float32) * 0.05,
    }
    # Hoisted static relative-position bias gather (PyTorch eval-mode `self.ab`).
    params["ab"] = params["attention_biases"][:, bias_idxs]   # (H, N_, N)

    x = jax.random.normal(ks[7], (B, N, in_dim), jnp.float32)

    fwd = jax.jit(lambda xx, pp: attention_subsample_forward(xx, pp, cfg))
    y = jax.block_until_ready(fwd(x, params))

    y_ref = jax.block_until_ready(reference_forward(x, params, cfg))

    assert y.shape == (B, N_, out_dim), y.shape
    # bf16 MXU operands with f32 accumulation -> slightly looser tolerance.
    np.testing.assert_allclose(np.asarray(y), np.asarray(y_ref),
                               rtol=2e-2, atol=2e-2)
    print("KERNEL_OK")
</pallas_src>

<mosaic_0001>
module attributes {stable_mosaic.version = 11 : i64} {
  func.func @_fused_attn_subsample_kernel(%arg0: i32, %arg1: memref<1x16x32xf32, #tpu.memory_space<vmem>>, %arg2: memref<1x4x32xf32, #tpu.memory_space<vmem>>, %arg3: memref<32x192xf32, #tpu.memory_space<vmem>>, %arg4: memref<1x192xf32, #tpu.memory_space<vmem>>, %arg5: memref<32x64xf32, #tpu.memory_space<vmem>>, %arg6: memref<1x64xf32, #tpu.memory_space<vmem>>, %arg7: memref<4x4x16xf32, #tpu.memory_space<vmem>>, %arg8: memref<128x32xf32, #tpu.memory_space<vmem>>, %arg9: memref<1x32xf32, #tpu.memory_space<vmem>>, %arg10: memref<1x4x32xf32, #tpu.memory_space<vmem>>) attributes {dimension_semantics = [#tpu.dimension_semantics<parallel>], iteration_bounds = array<i64: 2>, scalar_prefetch = 0 : i64, scratch_operands = 0 : i64, tpu.core_type = #tpu.core_type<tc>, window_params = [{transform_indices = @transform_0, window_bounds = array<i64: 1, 16, 32>}, {transform_indices = @transform_1, window_bounds = array<i64: 1, 4, 32>}, {pipeline_mode = #tpu.pipeline_mode<synchronous>, transform_indices = @transform_2, window_bounds = array<i64: 32, 192>}, {pipeline_mode = #tpu.pipeline_mode<synchronous>, transform_indices = @transform_3, window_bounds = array<i64: 1, 192>}, {pipeline_mode = #tpu.pipeline_mode<synchronous>, transform_indices = @transform_4, window_bounds = array<i64: 32, 64>}, {pipeline_mode = #tpu.pipeline_mode<synchronous>, transform_indices = @transform_5, window_bounds = array<i64: 1, 64>}, {pipeline_mode = #tpu.pipeline_mode<synchronous>, transform_indices = @transform_6, window_bounds = array<i64: 4, 4, 16>}, {pipeline_mode = #tpu.pipeline_mode<synchronous>, transform_indices = @transform_7, window_bounds = array<i64: 128, 32>}, {pipeline_mode = #tpu.pipeline_mode<synchronous>, transform_indices = @transform_8, window_bounds = array<i64: 1, 32>}, {transform_indices = @transform_9, window_bounds = array<i64: 1, 4, 32>}]} {
    %c0 = arith.constant 0 : index
    %c0_0 = arith.constant 0 : index
    %c0_1 = arith.constant 0 : index
    %0 = vector.load %arg1[%c0, %c0_0, %c0_1] : memref<1x16x32xf32, #tpu.memory_space<vmem>>, vector<1x16x32xf32>
    %1 = vector.shape_cast %0 : vector<1x16x32xf32> to vector<16x32xf32>
    %c0_2 = arith.constant 0 : index
    %c0_3 = arith.constant 0 : index
    %c0_4 = arith.constant 0 : index
    %2 = vector.load %arg2[%c0_2, %c0_3, %c0_4] : memref<1x4x32xf32, #tpu.memory_space<vmem>>, vector<1x4x32xf32>
    %3 = vector.shape_cast %2 : vector<1x4x32xf32> to vector<4x32xf32>
    %4 = arith.truncf %1 : vector<16x32xf32> to vector<16x32xbf16>
    %c0_5 = arith.constant 0 : index
    %c0_6 = arith.constant 0 : index
    %5 = vector.load %arg3[%c0_5, %c0_6] : memref<32x192xf32, #tpu.memory_space<vmem>>, vector<32x192xf32>
    %6 = arith.truncf %5 : vector<32x192xf32> to vector<32x192xbf16>
    %cst = arith.constant dense<0.000000e+00> : vector<16x192xf32>
    %7 = tpu.matmul %4, %6, %cst {dimension_numbers = #tpu.dot_dimension_numbers<[1], [0], [0], [1], [0, 0, 1, 1], [], []>} : vector<16x32xbf16>, vector<32x192xbf16>, vector<16x192xf32> -> vector<16x192xf32>
    %c0_7 = arith.constant 0 : index
    %c0_8 = arith.constant 0 : index
    %8 = vector.load %arg4[%c0_7, %c0_8] : memref<1x192xf32, #tpu.memory_space<vmem>>, vector<1x192xf32>
    %9 = vector.broadcast %8 : vector<1x192xf32> to vector<16x192xf32>
    %10 = arith.addf %7, %9 : vector<16x192xf32>
    %11 = arith.truncf %3 : vector<4x32xf32> to vector<4x32xbf16>
    %c0_9 = arith.constant 0 : index
    %c0_10 = arith.constant 0 : index
    %12 = vector.load %arg5[%c0_9, %c0_10] : memref<32x64xf32, #tpu.memory_space<vmem>>, vector<32x64xf32>
    %13 = arith.truncf %12 : vector<32x64xf32> to vector<32x64xbf16>
    %cst_11 = arith.constant dense<0.000000e+00> : vector<4x64xf32>
    %14 = tpu.matmul %11, %13, %cst_11 {dimension_numbers = #tpu.dot_dimension_numbers<[1], [0], [0], [1], [0, 0, 1, 1], [], []>} : vector<4x32xbf16>, vector<32x64xbf16>, vector<4x64xf32> -> vector<4x64xf32>
    %c0_12 = arith.constant 0 : index
    %c0_13 = arith.constant 0 : index
    %15 = vector.load %arg6[%c0_12, %c0_13] : memref<1x64xf32, #tpu.memory_space<vmem>>, vector<1x64xf32>
    %16 = vector.broadcast %15 : vector<1x64xf32> to vector<4x64xf32>
    %17 = arith.addf %14, %16 : vector<4x64xf32>
    %c0_14 = arith.constant 0 : index
    %c0_15 = arith.constant 0 : index
    %c0_16 = arith.constant 0 : index
    %18 = vector.load %arg7[%c0_14, %c0_15, %c0_16] : memref<4x4x16xf32, #tpu.memory_space<vmem>>, vector<4x4x16xf32>
    %19 = vector.extract_strided_slice %10 {offsets = [0, 0], sizes = [16, 16], strides = [1, 1]} : vector<16x192xf32> to vector<16x16xf32>
    %20 = vector.extract_strided_slice %10 {offsets = [0, 16], sizes = [16, 32], strides = [1, 1]} : vector<16x192xf32> to vector<16x32xf32>
    %21 = vector.extract_strided_slice %17 {offsets = [0, 0], sizes = [4, 16], strides = [1, 1]} : vector<4x64xf32> to vector<4x16xf32>
    %22 = arith.truncf %21 : vector<4x16xf32> to vector<4x16xbf16>
    %23 = arith.truncf %19 : vector<16x16xf32> to vector<16x16xbf16>
    %cst_17 = arith.constant dense<0.000000e+00> : vector<4x16xf32>
    %24 = tpu.matmul %22, %23, %cst_17 {dimension_numbers = #tpu.dot_dimension_numbers<[1], [1], [0], [0], [0, 0, 1, 0], [], []>} : vector<4x16xbf16>, vector<16x16xbf16>, vector<4x16xf32> -> vector<4x16xf32>
    %cst_18 = arith.constant 2.500000e-01 : f32
    %25 = vector.broadcast %cst_18 : f32 to vector<4x16xf32>
    %26 = arith.mulf %24, %25 : vector<4x16xf32>
    %27 = vector.extract_strided_slice %18 {offsets = [0, 0, 0], sizes = [1, 4, 16], strides = [1, 1, 1]} : vector<4x4x16xf32> to vector<1x4x16xf32>
    %28 = vector.shape_cast %27 : vector<1x4x16xf32> to vector<4x16xf32>
    %29 = arith.addf %26, %28 : vector<4x16xf32>
    %cst_19 = arith.constant dense<0xFF800000> : vector<4xf32>
    %30 = vector.multi_reduction <maximumf>, %29, %cst_19 [1] : vector<4x16xf32> to vector<4xf32>
    %31 = vector.shape_cast %30 : vector<4xf32> to vector<4x1xf32>
    %32 = vector.broadcast %31 : vector<4x1xf32> to vector<4x16xf32>
    %33 = arith.subf %29, %32 : vector<4x16xf32>
    %34 = math.exp %33 : vector<4x16xf32>
    %cst_20 = arith.constant dense<0.000000e+00> : vector<4xf32>
    %35 = vector.multi_reduction <add>, %34, %cst_20 [1] : vector<4x16xf32> to vector<4xf32>
    %36 = vector.shape_cast %35 : vector<4xf32> to vector<4x1xf32>
    %37 = tpu.reciprocal %36 {approx = true} : vector<4x1xf32> -> vector<4x1xf32>
    %38 = vector.broadcast %37 : vector<4x1xf32> to vector<4x16xf32>
    %39 = arith.mulf %34, %38 : vector<4x16xf32>
    %40 = arith.truncf %39 : vector<4x16xf32> to vector<4x16xbf16>
    %41 = arith.truncf %20 : vector<16x32xf32> to vector<16x32xbf16>
    %cst_21 = arith.constant dense<0.000000e+00> : vector<4x32xf32>
    %42 = tpu.matmul %40, %41, %cst_21 {dimension_numbers = #tpu.dot_dimension_numbers<[1], [0], [0], [1], [0, 0, 1, 1], [], []>} : vector<4x16xbf16>, vector<16x32xbf16>, vector<4x32xf32> -> vector<4x32xf32>
    %43 = vector.extract_strided_slice %10 {offsets = [0, 48], sizes = [16, 16], strides = [1, 1]} : vector<16x192xf32> to vector<16x16xf32>
    %44 = vector.extract_strided_slice %10 {offsets = [0, 64], sizes = [16, 32], strides = [1, 1]} : vector<16x192xf32> to vector<16x32xf32>
    %45 = vector.extract_strided_slice %17 {offsets = [0, 16], sizes = [4, 16], strides = [1, 1]} : vector<4x64xf32> to vector<4x16xf32>
    %46 = arith.truncf %45 : vector<4x16xf32> to vector<4x16xbf16>
    %47 = arith.truncf %43 : vector<16x16xf32> to vector<16x16xbf16>
    %cst_22 = arith.constant dense<0.000000e+00> : vector<4x16xf32>
    %48 = tpu.matmul %46, %47, %cst_22 {dimension_numbers = #tpu.dot_dimension_numbers<[1], [1], [0], [0], [0, 0, 1, 0], [], []>} : vector<4x16xbf16>, vector<16x16xbf16>, vector<4x16xf32> -> vector<4x16xf32>
    %cst_23 = arith.constant 2.500000e-01 : f32
    %49 = vector.broadcast %cst_23 : f32 to vector<4x16xf32>
    %50 = arith.mulf %48, %49 : vector<4x16xf32>
    %51 = vector.extract_strided_slice %18 {offsets = [1, 0, 0], sizes = [1, 4, 16], strides = [1, 1, 1]} : vector<4x4x16xf32> to vector<1x4x16xf32>
    %52 = vector.shape_cast %51 : vector<1x4x16xf32> to vector<4x16xf32>
    %53 = arith.addf %50, %52 : vector<4x16xf32>
    %cst_24 = arith.constant dense<0xFF800000> : vector<4xf32>
    %54 = vector.multi_reduction <maximumf>, %53, %cst_24 [1] : vector<4x16xf32> to vector<4xf32>
    %55 = vector.shape_cast %54 : vector<4xf32> to vector<4x1xf32>
    %56 = vector.broadcast %55 : vector<4x1xf32> to vector<4x16xf32>
    %57 = arith.subf %53, %56 : vector<4x16xf32>
    %58 = math.exp %57 : vector<4x16xf32>
    %cst_25 = arith.constant dense<0.000000e+00> : vector<4xf32>
    %59 = vector.multi_reduction <add>, %58, %cst_25 [1] : vector<4x16xf32> to vector<4xf32>
    %60 = vector.shape_cast %59 : vector<4xf32> to vector<4x1xf32>
    %61 = tpu.reciprocal %60 {approx = true} : vector<4x1xf32> -> vector<4x1xf32>
    %62 = vector.broadcast %61 : vector<4x1xf32> to vector<4x16xf32>
    %63 = arith.mulf %58, %62 : vector<4x16xf32>
    %64 = arith.truncf %63 : vector<4x16xf32> to vector<4x16xbf16>
    %65 = arith.truncf %44 : vector<16x32xf32> to vector<16x32xbf16>
    %cst_26 = arith.constant dense<0.000000e+00> : vector<4x32xf32>
    %66 = tpu.matmul %64, %65, %cst_26 {dimension_numbers = #tpu.dot_dimension_numbers<[1], [0], [0], [1], [0, 0, 1, 1], [], []>} : vector<4x16xbf16>, vector<16x32xbf16>, vector<4x32xf32> -> vector<4x32xf32>
    %67 = vector.extract_strided_slice %10 {offsets = [0, 96], sizes = [16, 16], strides = [1, 1]} : vector<16x192xf32> to vector<16x16xf32>
    %68 = vector.extract_strided_slice %10 {offsets = [0, 112], sizes = [16, 32], strides = [1, 1]} : vector<16x192xf32> to vector<16x32xf32>
    %69 = vector.extract_strided_slice %17 {offsets = [0, 32], sizes = [4, 16], strides = [1, 1]} : vector<4x64xf32> to vector<4x16xf32>
    %70 = arith.truncf %69 : vector<4x16xf32> to vector<4x16xbf16>
    %71 = arith.truncf %67 : vector<16x16xf32> to vector<16x16xbf16>
    %cst_27 = arith.constant dense<0.000000e+00> : vector<4x16xf32>
    %72 = tpu.matmul %70, %71, %cst_27 {dimension_numbers = #tpu.dot_dimension_numbers<[1], [1], [0], [0], [0, 0, 1, 0], [], []>} : vector<4x16xbf16>, vector<16x16xbf16>, vector<4x16xf32> -> vector<4x16xf32>
    %cst_28 = arith.constant 2.500000e-01 : f32
    %73 = vector.broadcast %cst_28 : f32 to vector<4x16xf32>
    %74 = arith.mulf %72, %73 : vector<4x16xf32>
    %75 = vector.extract_strided_slice %18 {offsets = [2, 0, 0], sizes = [1, 4, 16], strides = [1, 1, 1]} : vector<4x4x16xf32> to vector<1x4x16xf32>
    %76 = vector.shape_cast %75 : vector<1x4x16xf32> to vector<4x16xf32>
    %77 = arith.addf %74, %76 : vector<4x16xf32>
    %cst_29 = arith.constant dense<0xFF800000> : vector<4xf32>
    %78 = vector.multi_reduction <maximumf>, %77, %cst_29 [1] : vector<4x16xf32> to vector<4xf32>
    %79 = vector.shape_cast %78 : vector<4xf32> to vector<4x1xf32>
    %80 = vector.broadcast %79 : vector<4x1xf32> to vector<4x16xf32>
    %81 = arith.subf %77, %80 : vector<4x16xf32>
    %82 = math.exp %81 : vector<4x16xf32>
    %cst_30 = arith.constant dense<0.000000e+00> : vector<4xf32>
    %83 = vector.multi_reduction <add>, %82, %cst_30 [1] : vector<4x16xf32> to vector<4xf32>
    %84 = vector.shape_cast %83 : vector<4xf32> to vector<4x1xf32>
    %85 = tpu.reciprocal %84 {approx = true} : vector<4x1xf32> -> vector<4x1xf32>
    %86 = vector.broadcast %85 : vector<4x1xf32> to vector<4x16xf32>
    %87 = arith.mulf %82, %86 : vector<4x16xf32>
    %88 = arith.truncf %87 : vector<4x16xf32> to vector<4x16xbf16>
    %89 = arith.truncf %68 : vector<16x32xf32> to vector<16x32xbf16>
    %cst_31 = arith.constant dense<0.000000e+00> : vector<4x32xf32>
    %90 = tpu.matmul %88, %89, %cst_31 {dimension_numbers = #tpu.dot_dimension_numbers<[1], [0], [0], [1], [0, 0, 1, 1], [], []>} : vector<4x16xbf16>, vector<16x32xbf16>, vector<4x32xf32> -> vector<4x32xf32>
    %91 = vector.extract_strided_slice %10 {offsets = [0, 144], sizes = [16, 16], strides = [1, 1]} : vector<16x192xf32> to vector<16x16xf32>
    %92 = vector.extract_strided_slice %10 {offsets = [0, 160], sizes = [16, 32], strides = [1, 1]} : vector<16x192xf32> to vector<16x32xf32>
    %93 = vector.extract_strided_slice %17 {offsets = [0, 48], sizes = [4, 16], strides = [1, 1]} : vector<4x64xf32> to vector<4x16xf32>
    %94 = arith.truncf %93 : vector<4x16xf32> to vector<4x16xbf16>
    %95 = arith.truncf %91 : vector<16x16xf32> to vector<16x16xbf16>
    %cst_32 = arith.constant dense<0.000000e+00> : vector<4x16xf32>
    %96 = tpu.matmul %94, %95, %cst_32 {dimension_numbers = #tpu.dot_dimension_numbers<[1], [1], [0], [0], [0, 0, 1, 0], [], []>} : vector<4x16xbf16>, vector<16x16xbf16>, vector<4x16xf32> -> vector<4x16xf32>
    %cst_33 = arith.constant 2.500000e-01 : f32
    %97 = vector.broadcast %cst_33 : f32 to vector<4x16xf32>
    %98 = arith.mulf %96, %97 : vector<4x16xf32>
    %99 = vector.extract_strided_slice %18 {offsets = [3, 0, 0], sizes = [1, 4, 16], strides = [1, 1, 1]} : vector<4x4x16xf32> to vector<1x4x16xf32>
    %100 = vector.shape_cast %99 : vector<1x4x16xf32> to vector<4x16xf32>
    %101 = arith.addf %98, %100 : vector<4x16xf32>
    %cst_34 = arith.constant dense<0xFF800000> : vector<4xf32>
    %102 = vector.multi_reduction <maximumf>, %101, %cst_34 [1] : vector<4x16xf32> to vector<4xf32>
    %103 = vector.shape_cast %102 : vector<4xf32> to vector<4x1xf32>
    %104 = vector.broadcast %103 : vector<4x1xf32> to vector<4x16xf32>
    %105 = arith.subf %101, %104 : vector<4x16xf32>
    %106 = math.exp %105 : vector<4x16xf32>
    %cst_35 = arith.constant dense<0.000000e+00> : vector<4xf32>
    %107 = vector.multi_reduction <add>, %106, %cst_35 [1] : vector<4x16xf32> to vector<4xf32>
    %108 = vector.shape_cast %107 : vector<4xf32> to vector<4x1xf32>
    %109 = tpu.reciprocal %108 {approx = true} : vector<4x1xf32> -> vector<4x1xf32>
    %110 = vector.broadcast %109 : vector<4x1xf32> to vector<4x16xf32>
    %111 = arith.mulf %106, %110 : vector<4x16xf32>
    %112 = arith.truncf %111 : vector<4x16xf32> to vector<4x16xbf16>
    %113 = arith.truncf %92 : vector<16x32xf32> to vector<16x32xbf16>
    %cst_36 = arith.constant dense<0.000000e+00> : vector<4x32xf32>
    %114 = tpu.matmul %112, %113, %cst_36 {dimension_numbers = #tpu.dot_dimension_numbers<[1], [0], [0], [1], [0, 0, 1, 1], [], []>} : vector<4x16xbf16>, vector<16x32xbf16>, vector<4x32xf32> -> vector<4x32xf32>
    %115 = tpu.concatenate %42, %66, %90, %114 in 1 : vector<4x32xf32>, vector<4x32xf32>, vector<4x32xf32>, vector<4x32xf32> -> vector<4x128xf32>
    %cst_37 = arith.constant 3.000000e+00 : f32
    %116 = vector.broadcast %cst_37 : f32 to vector<4x128xf32>
    %117 = arith.addf %115, %116 : vector<4x128xf32>
    %cst_38 = arith.constant 0.000000e+00 : f32
    %cst_39 = arith.constant 6.000000e+00 : f32
    %118 = vector.broadcast %cst_38 : f32 to vector<4x128xf32>
    %119 = arith.maximumf %118, %117 : vector<4x128xf32>
    %120 = vector.broadcast %cst_39 : f32 to vector<4x128xf32>
    %121 = arith.minimumf %120, %119 : vector<4x128xf32>
    %122 = arith.mulf %115, %121 : vector<4x128xf32>
    %cst_40 = arith.constant 0.166666672 : f32
    %123 = vector.broadcast %cst_40 : f32 to vector<4x128xf32>
    %124 = arith.mulf %122, %123 : vector<4x128xf32>
    %125 = arith.truncf %124 : vector<4x128xf32> to vector<4x128xbf16>
    %c0_41 = arith.constant 0 : index
    %c0_42 = arith.constant 0 : index
    %126 = vector.load %arg8[%c0_41, %c0_42] : memref<128x32xf32, #tpu.memory_space<vmem>>, vector<128x32xf32>
    %127 = arith.truncf %126 : vector<128x32xf32> to vector<128x32xbf16>
    %cst_43 = arith.constant dense<0.000000e+00> : vector<4x32xf32>
    %128 = tpu.matmul %125, %127, %cst_43 {dimension_numbers = #tpu.dot_dimension_numbers<[1], [0], [0], [1], [0, 0, 1, 1], [], []>} : vector<4x128xbf16>, vector<128x32xbf16>, vector<4x32xf32> -> vector<4x32xf32>
    %c0_44 = arith.constant 0 : index
    %c0_45 = arith.constant 0 : index
    %129 = vector.load %arg9[%c0_44, %c0_45] : memref<1x32xf32, #tpu.memory_space<vmem>>, vector<1x32xf32>
    %130 = vector.broadcast %129 : vector<1x32xf32> to vector<4x32xf32>
    %131 = arith.addf %128, %130 : vector<4x32xf32>
    %c0_46 = arith.constant 0 : index
    %c0_47 = arith.constant 0 : index
    %c0_48 = arith.constant 0 : index
    %132 = vector.load %arg10[%c0_46, %c0_47, %c0_48] : memref<1x4x32xf32, #tpu.memory_space<vmem>>, vector<1x4x32xf32>
    %133 = vector.shape_cast %132 : vector<1x4x32xf32> to vector<4x32xf32>
    %134 = vector.shape_cast %131 : vector<4x32xf32> to vector<1x4x32xf32>
    tpu.vector_store %arg10[%c0_46, %c0_47, %c0_48], %134 {strides = array<i32>} : memref<1x4x32xf32, #tpu.memory_space<vmem>>, vector<1x4x32xf32>,
    return
  }
  func.func @transform_0(%arg0: i32) -> (i32, i32, i32) {
    %c0_i32 = arith.constant 0 : i32
    %c0_i32_0 = arith.constant 0 : i32
    %c0_i32_1 = arith.constant 0 : i32
    return %arg0, %c0_i32, %c0_i32_0 : i32, i32, i32
  }
  func.func @transform_1(%arg0: i32) -> (i32, i32, i32) {
    %c0_i32 = arith.constant 0 : i32
    %c0_i32_0 = arith.constant 0 : i32
    %c0_i32_1 = arith.constant 0 : i32
    return %arg0, %c0_i32, %c0_i32_0 : i32, i32, i32
  }
  func.func @transform_2(%arg0: i32) -> (i32, i32) {
    %c0_i32 = arith.constant 0 : i32
    %c0_i32_0 = arith.constant 0 : i32
    %c0_i32_1 = arith.constant 0 : i32
    return %c0_i32, %c0_i32_0 : i32, i32
  }
  func.func @transform_3(%arg0: i32) -> (i32, i32) {
    %c0_i32 = arith.constant 0 : i32
    %c0_i32_0 = arith.constant 0 : i32
    %c0_i32_1 = arith.constant 0 : i32
    return %c0_i32, %c0_i32_0 : i32, i32
  }
  func.func @transform_4(%arg0: i32) -> (i32, i32) {
    %c0_i32 = arith.constant 0 : i32
    %c0_i32_0 = arith.constant 0 : i32
    %c0_i32_1 = arith.constant 0 : i32
    return %c0_i32, %c0_i32_0 : i32, i32
  }
  func.func @transform_5(%arg0: i32) -> (i32, i32) {
    %c0_i32 = arith.constant 0 : i32
    %c0_i32_0 = arith.constant 0 : i32
    %c0_i32_1 = arith.constant 0 : i32
    return %c0_i32, %c0_i32_0 : i32, i32
  }
  func.func @transform_6(%arg0: i32) -> (i32, i32, i32) {
    %c0_i32 = arith.constant 0 : i32
    %c0_i32_0 = arith.constant 0 : i32
    %c0_i32_1 = arith.constant 0 : i32
    %c0_i32_2 = arith.constant 0 : i32
    return %c0_i32, %c0_i32_0, %c0_i32_1 : i32, i32, i32
  }
  func.func @transform_7(%arg0: i32) -> (i32, i32) {
    %c0_i32 = arith.constant 0 : i32
    %c0_i32_0 = arith.constant 0 : i32
    %c0_i32_1 = arith.constant 0 : i32
    return %c0_i32, %c0_i32_0 : i32, i32
  }
  func.func @transform_8(%arg0: i32) -> (i32, i32) {
    %c0_i32 = arith.constant 0 : i32
    %c0_i32_0 = arith.constant 0 : i32
    %c0_i32_1 = arith.constant 0 : i32
    return %c0_i32, %c0_i32_0 : i32, i32
  }
  func.func @transform_9(%arg0: i32) -> (i32, i32, i32) {
    %c0_i32 = arith.constant 0 : i32
    %c0_i32_0 = arith.constant 0 : i32
    %c0_i32_1 = arith.constant 0 : i32
    return %arg0, %c0_i32, %c0_i32_0 : i32, i32, i32
  }
}

</mosaic_0001>

<llo_original>
// kernel: _lambda_.1
$region0: #{_lambda_.1}
  #allocation0 [shape = 'u32[]', space=smem, size = 0x4, offset = 0x4, fixed_abs, tag = 'smem constant byte address 0x4 - core index']
  #allocation1 [shape = 'u32[72,128]{1,0:T(1,128)}', space=vmem, size = 0x9000, scoped, tag = 'internal scratch']
  %s0 = inlined_call_operand.vmem [shape: f32[2,16,32], index: 0, kind: input, shape index: {}]
  %s1 = inlined_call_operand.vmem [shape: f32[2,4,32], index: 1, kind: input, shape index: {}]
  %s2 = inlined_call_operand.vmem [shape: f32[32,192], index: 2, kind: input, shape index: {}]
  %s3 = inlined_call_operand.vmem [shape: f32[1,192], index: 3, kind: input, shape index: {}]
  %s4 = inlined_call_operand.vmem [shape: f32[32,64], index: 4, kind: input, shape index: {}]
  %s5 = inlined_call_operand.vmem [shape: f32[1,64], index: 5, kind: input, shape index: {}]
  %s6 = inlined_call_operand.vmem [shape: f32[4,4,16], index: 6, kind: input, shape index: {}]
  %s7 = inlined_call_operand.vmem [shape: f32[128,32], index: 7, kind: input, shape index: {}]
  %s8 = inlined_call_operand.vmem [shape: f32[1,32], index: 8, kind: input, shape index: {}]
  %s9 = inlined_call_operand.hbm [shape: f32[2,4,32], index: 9, kind: output, shape index: {}]
  %s10 = sld [smem:[#allocation0]]
  $region69: #{_lambda_.1} parent=0
    _
  %s12 = ssub.s32 1, %s10
  %s13 = scalar_select 0, %s12, %s10
  $region1: #{_lambda_.1} parent=0
    #allocation2 [shape = 'u8[4096]{0}', space=vmem, size = 0x1000, scoped, tag = 'output window, operand 0']
    #allocation3 [shape = 's32[2]{0}', space=sflag, size = 0x8, scoped, tag = 'scoped memory for _lambda_.1']
    %14 = vsyncpa [#allocation3], 0
    %s15 = scalar_lea.sflag [#allocation3], 1
    %16 = vsyncpa %s15, 0
    loop: start=0, step=1, limit=4
    $region2: #{_lambda_.1} parent=1 // loop_pre_header
      _
    $region3: #{_lambda_.1} parent=1 // loop_header
      %s18 = sphi 0, %s22
      %p19 = scmp.ge.s32.totalorder %s18, 4
      %s28 = sphi 0, %s30
      %s31 = sphi 0, %s28
      %s32 = sphi 0, %s31
      %s48 = sphi 0, %s32
      %s54 = sphi 0, %s56
      %s57 = sphi 0, %s54
      %s58 = sphi 0, %s57
      %s74 = sphi 0, %s58
      %s78 = sphi 0, %s78
      %s80 = sphi 0, %s78
      %s81 = sphi 0, %s80
      %s95 = sphi 0, %s81
      %s99 = sphi 0, %s99
      %s101 = sphi 0, %s99
      %s102 = sphi 0, %s101
      %s116 = sphi 0, %s102
      %s120 = sphi 0, %s120
      %s122 = sphi 0, %s120
      %s123 = sphi 0, %s122
      %s137 = sphi 0, %s123
      %s141 = sphi 0, %s141
      %s143 = sphi 0, %s141
      %s144 = sphi 0, %s143
      %s158 = sphi 0, %s144
      %s162 = sphi 0, %s162
      %s164 = sphi 0, %s162
      %s165 = sphi 0, %s164
      %s179 = sphi 0, %s165
      %s183 = sphi 0, %s183
      %s185 = sphi 0, %s183
      %s186 = sphi 0, %s185
      %s200 = sphi 0, %s186
      %s204 = sphi 0, %s204
      %s206 = sphi 0, %s204
      %s207 = sphi 0, %s206
      %s221 = sphi 0, %s207
      %s227 = sphi 0, %s229
      %s230 = sphi 0, %s227
      %s231 = sphi 0, %s230
      %s247 = sphi 0, %s231
    $region4: #{_lambda_.1} parent=1 // loop_header_branch
      %21 = sbr.rel (%p19) target = $region8
    $region5: #{_lambda_.1} parent=1 // loop_body
      %s23 = ssub.s32 %s18, 1
      %s24 = ssub.s32 %s18, 2
      %s25 = sadd.s32 %s18, 1
      %s26 = ssub.s32 %s18, %s25
      %p27 = scmp.eq.s32.totalorder %s26, 0
      %s29 = sadd.s32 %s28, 1
      %s30 = scalar_select %p27, %s28, %s29
      %p33 = pneg %p27
      %p34 = scmp.eq.s32.totalorder %s18, 1
      %p35 = por %p33, %p34
      %p36 = scmp.ne.s32.totalorder %s28, %s31
      %p37 = scmp.eq.s32.totalorder %s18, 0
      %p38 = por %p36, %p37
      %p39 = scmp.ne.s32.totalorder %s28, %s31
      %p40 = scmp.eq.s32.totalorder %s23, 1
      %p41 = por %p39, %p40
      %p42 = scmp.ne.s32.totalorder %s31, %s32
      %p43 = scmp.eq.s32.totalorder %s23, 0
      %p44 = por %p42, %p43
      %p45 = scmp.ne.s32.totalorder %s31, %s32
      %p46 = scmp.eq.s32.totalorder %s24, 1
      %p47 = por %p45, %p46
      %p49 = scmp.ne.s32.totalorder %s32, %s48
      %p50 = scmp.eq.s32.totalorder %s24, 0
      %p51 = por %p49, %p50
      %s52 = ssub.s32 %s18, %s25
      %p53 = scmp.eq.s32.totalorder %s52, 0
      %s55 = sadd.s32 %s54, 1
      %s56 = scalar_select %p53, %s54, %s55
      %p59 = pneg %p53
      %p60 = scmp.eq.s32.totalorder %s18, 1
      %p61 = por %p59, %p60
      %p62 = scmp.ne.s32.totalorder %s54, %s57
      %p63 = scmp.eq.s32.totalorder %s18, 0
      %p64 = por %p62, %p63
      %p65 = scmp.ne.s32.totalorder %s54, %s57
      %p66 = scmp.eq.s32.totalorder %s23, 1
      %p67 = por %p65, %p66
      %p68 = scmp.ne.s32.totalorder %s57, %s58
      %p69 = scmp.eq.s32.totalorder %s23, 0
      %p70 = por %p68, %p69
      %p71 = scmp.ne.s32.totalorder %s57, %s58
      %p72 = scmp.eq.s32.totalorder %s24, 1
      %p73 = por %p71, %p72
      %p75 = scmp.ne.s32.totalorder %s58, %s74
      %p76 = scmp.eq.s32.totalorder %s24, 0
      %p77 = por %p75, %p76
      %s79 = sadd.s32 %s78, 1
      %p82 = scmp.eq.s32.totalorder %s18, 1
      %p83 = scmp.ne.s32.totalorder %s78, %s80
      %p84 = scmp.eq.s32.totalorder %s18, 0
      %p85 = por %p83, %p84
      %p86 = scmp.ne.s32.totalorder %s78, %s80
      %p87 = scmp.eq.s32.totalorder %s23, 1
      %p88 = por %p86, %p87
      %p89 = scmp.ne.s32.totalorder %s80, %s81
      %p90 = scmp.eq.s32.totalorder %s23, 0
      %p91 = por %p89, %p90
      %p92 = scmp.ne.s32.totalorder %s80, %s81
      %p93 = scmp.eq.s32.totalorder %s24, 1
      %p94 = por %p92, %p93
      %p96 = scmp.ne.s32.totalorder %s81, %s95
      %p97 = scmp.eq.s32.totalorder %s24, 0
      %p98 = por %p96, %p97
      %s100 = sadd.s32 %s99, 1
      %p103 = scmp.eq.s32.totalorder %s18, 1
      %p104 = scmp.ne.s32.totalorder %s99, %s101
      %p105 = scmp.eq.s32.totalorder %s18, 0
      %p106 = por %p104, %p105
      %p107 = scmp.ne.s32.totalorder %s99, %s101
      %p108 = scmp.eq.s32.totalorder %s23, 1
      %p109 = por %p107, %p108
      %p110 = scmp.ne.s32.totalorder %s101, %s102
      %p111 = scmp.eq.s32.totalorder %s23, 0
      %p112 = por %p110, %p111
      %p113 = scmp.ne.s32.totalorder %s101, %s102
      %p114 = scmp.eq.s32.totalorder %s24, 1
      %p115 = por %p113, %p114
      %p117 = scmp.ne.s32.totalorder %s102, %s116
      %p118 = scmp.eq.s32.totalorder %s24, 0
      %p119 = por %p117, %p118
      %s121 = sadd.s32 %s120, 1
      %p124 = scmp.eq.s32.totalorder %s18, 1
      %p125 = scmp.ne.s32.totalorder %s120, %s122
      %p126 = scmp.eq.s32.totalorder %s18, 0
      %p127 = por %p125, %p126
      %p128 = scmp.ne.s32.totalorder %s120, %s122
      %p129 = scmp.eq.s32.totalorder %s23, 1
      %p130 = por %p128, %p129
      %p131 = scmp.ne.s32.totalorder %s122, %s123
      %p132 = scmp.eq.s32.totalorder %s23, 0
      %p133 = por %p131, %p132
      %p134 = scmp.ne.s32.totalorder %s122, %s123
      %p135 = scmp.eq.s32.totalorder %s24, 1
      %p136 = por %p134, %p135
      %p138 = scmp.ne.s32.totalorder %s123, %s137
      %p139 = scmp.eq.s32.totalorder %s24, 0
      %p140 = por %p138, %p139
      %s142 = sadd.s32 %s141, 1
      %p145 = scmp.eq.s32.totalorder %s18, 1
      %p146 = scmp.ne.s32.totalorder %s141, %s143
      %p147 = scmp.eq.s32.totalorder %s18, 0
      %p148 = por %p146, %p147
      %p149 = scmp.ne.s32.totalorder %s141, %s143
      %p150 = scmp.eq.s32.totalorder %s23, 1
      %p151 = por %p149, %p150
      %p152 = scmp.ne.s32.totalorder %s143, %s144
      %p153 = scmp.eq.s32.totalorder %s23, 0
      %p154 = por %p152, %p153
      %p155 = scmp.ne.s32.totalorder %s143, %s144
      %p156 = scmp.eq.s32.totalorder %s24, 1
      %p157 = por %p155, %p156
      %p159 = scmp.ne.s32.totalorder %s144, %s158
      %p160 = scmp.eq.s32.totalorder %s24, 0
      %p161 = por %p159, %p160
      %s163 = sadd.s32 %s162, 1
      %p166 = scmp.eq.s32.totalorder %s18, 1
      %p167 = scmp.ne.s32.totalorder %s162, %s164
      %p168 = scmp.eq.s32.totalorder %s18, 0
      %p169 = por %p167, %p168
      %p170 = scmp.ne.s32.totalorder %s162, %s164
      %p171 = scmp.eq.s32.totalorder %s23, 1
      %p172 = por %p170, %p171
      %p173 = scmp.ne.s32.totalorder %s164, %s165
      %p174 = scmp.eq.s32.totalorder %s23, 0
      %p175 = por %p173, %p174
      %p176 = scmp.ne.s32.totalorder %s164, %s165
      %p177 = scmp.eq.s32.totalorder %s24, 1
      %p178 = por %p176, %p177
      %p180 = scmp.ne.s32.totalorder %s165, %s179
      %p181 = scmp.eq.s32.totalorder %s24, 0
      %p182 = por %p180, %p181
      %s184 = sadd.s32 %s183, 1
      %p187 = scmp.eq.s32.totalorder %s18, 1
      %p188 = scmp.ne.s32.totalorder %s183, %s185
      %p189 = scmp.eq.s32.totalorder %s18, 0
      %p190 = por %p188, %p189
      %p191 = scmp.ne.s32.totalorder %s183, %s185
      %p192 = scmp.eq.s32.totalorder %s23, 1
      %p193 = por %p191, %p192
      %p194 = scmp.ne.s32.totalorder %s185, %s186
      %p195 = scmp.eq.s32.totalorder %s23, 0
      %p196 = por %p194, %p195
      %p197 = scmp.ne.s32.totalorder %s185, %s186
      %p198 = scmp.eq.s32.totalorder %s24, 1
      %p199 = por %p197, %p198
      %p201 = scmp.ne.s32.totalorder %s186, %s200
      %p202 = scmp.eq.s32.totalorder %s24, 0
      %p203 = por %p201, %p202
      %s205 = sadd.s32 %s204, 1
      %p208 = scmp.eq.s32.totalorder %s18, 1
      %p209 = scmp.ne.s32.totalorder %s204, %s206
      %p210 = scmp.eq.s32.totalorder %s18, 0
      %p211 = por %p209, %p210
      %p212 = scmp.ne.s32.totalorder %s204, %s206
      %p213 = scmp.eq.s32.totalorder %s23, 1
      %p214 = por %p212, %p213
      %p215 = scmp.ne.s32.totalorder %s206, %s207
      %p216 = scmp.eq.s32.totalorder %s23, 0
      %p217 = por %p215, %p216
      %p218 = scmp.ne.s32.totalorder %s206, %s207
      %p219 = scmp.eq.s32.totalorder %s24, 1
      %p220 = por %p218, %p219
      %p222 = scmp.ne.s32.totalorder %s207, %s221
      %p223 = scmp.eq.s32.totalorder %s24, 0
      %p224 = por %p222, %p223
      %s225 = ssub.s32 %s18, %s25
      %p226 = scmp.eq.s32.totalorder %s225, 0
      %s228 = sadd.s32 %s227, 1
      %s229 = scalar_select %p226, %s227, %s228
      %p232 = pneg %p226
      %p233 = scmp.eq.s32.totalorder %s18, 1
      %p234 = por %p232, %p233
      %p235 = scmp.ne.s32.totalorder %s227, %s230
      %p236 = scmp.eq.s32.totalorder %s18, 0
      %p237 = por %p235, %p236
      %p238 = scmp.ne.s32.totalorder %s227, %s230
      %p239 = scmp.eq.s32.totalorder %s23, 1
      %p240 = por %p238, %p239
      %p241 = scmp.ne.s32.totalorder %s230, %s231
      %p242 = scmp.eq.s32.totalorder %s23, 0
      %p243 = por %p241, %p242
      %p244 = scmp.ne.s32.totalorder %s230, %s231
      %p245 = scmp.eq.s32.totalorder %s24, 1
      %p246 = por %p244, %p245
      %p248 = scmp.ne.s32.totalorder %s231, %s247
      %p249 = scmp.eq.s32.totalorder %s24, 0
      %p250 = por %p248, %p249
      %p251 = scmp.le.s32.totalorder 1, %s18
      %p252 = scmp.lt.s32.totalorder %s18, 3
      %p253 = pnand %p251, %p252
      %p254 = pneg %p253
      // Predicated region
      $region9: #{_lambda_.1} parent=5 // pred_check
        _
      $region10: #{_lambda_.1} parent=5 // pred_check_branch
        %256 = sbr.rel (%p253) target = $region12
      $region11: #{_lambda_.1} parent=5 // pred_region
        %s257 = ssub.s32 %s18, 1
        // Predicated region
        $region13: #{_lambda_.1} parent=11 // pred_check
          %p258 = pneg %p91
        $region14: #{_lambda_.1} parent=11 // pred_check_branch
          %260 = sbr.rel (%p258) target = $region16
        $region15: #{_lambda_.1} parent=11 // pred_region
          _
        $region16: #{_lambda_.1} parent=11 // pred_fallthru
          _
        // Predicated region
        $region17: #{_lambda_.1} parent=11 // pred_check
          %p261 = pneg %p112
        $region18: #{_lambda_.1} parent=11 // pred_check_branch
          %263 = sbr.rel (%p261) target = $region20
        $region19: #{_lambda_.1} parent=11 // pred_region
          _
        $region20: #{_lambda_.1} parent=11 // pred_fallthru
          _
        // Predicated region
        $region21: #{_lambda_.1} parent=11 // pred_check
          %p264 = pneg %p133
        $region22: #{_lambda_.1} parent=11 // pred_check_branch
          %266 = sbr.rel (%p264) target = $region24
        $region23: #{_lambda_.1} parent=11 // pred_region
          _
        $region24: #{_lambda_.1} parent=11 // pred_fallthru
          _
        // Predicated region
        $region25: #{_lambda_.1} parent=11 // pred_check
          %p267 = pneg %p154
        $region26: #{_lambda_.1} parent=11 // pred_check_branch
          %269 = sbr.rel (%p267) target = $region28
        $region27: #{_lambda_.1} parent=11 // pred_region
          _
        $region28: #{_lambda_.1} parent=11 // pred_fallthru
          _
        // Predicated region
        $region29: #{_lambda_.1} parent=11 // pred_check
          %p270 = pneg %p175
        $region30: #{_lambda_.1} parent=11 // pred_check_branch
          %272 = sbr.rel (%p270) target = $region32
        $region31: #{_lambda_.1} parent=11 // pred_region
          _
        $region32: #{_lambda_.1} parent=11 // pred_fallthru
          _
        // Predicated region
        $region33: #{_lambda_.1} parent=11 // pred_check
          %p273 = pneg %p196
        $region34: #{_lambda_.1} parent=11 // pred_check_branch
          %275 = sbr.rel (%p273) target = $region36
        $region35: #{_lambda_.1} parent=11 // pred_region
          _
        $region36: #{_lambda_.1} parent=11 // pred_fallthru
          _
        // Predicated region
        $region37: #{_lambda_.1} parent=11 // pred_check
          %p276 = pneg %p217
        $region38: #{_lambda_.1} parent=11 // pred_check_branch
          %278 = sbr.rel (%p276) target = $region40
        $region39: #{_lambda_.1} parent=11 // pred_region
          _
        $region40: #{_lambda_.1} parent=11 // pred_fallthru
          _
      $region12: #{_lambda_.1} parent=5 // pred_fallthru
        _
      %p279 = scmp.lt.s32.totalorder %s18, 2
      // Predicated region
      $region41: #{_lambda_.1} parent=5 // pred_check
        %p280 = pneg %p279
      $region42: #{_lambda_.1} parent=5 // pred_check_branch
        %282 = sbr.rel (%p280) target = $region44
      $region43: #{_lambda_.1} parent=5 // pred_region
        // Predicated region
        $region45: #{_lambda_.1} parent=43 // pred_check
          %p283 = pneg %p38
        $region46: #{_lambda_.1} parent=43 // pred_check_branch
          %285 = sbr.rel (%p283) target = $region48
        $region47: #{_lambda_.1} parent=43 // pred_region
          %p286 = scmp.lt.s32.totalorder %s18, 1
          %s287 = scalar_select %p286, %s18, 1
          %s288 = smul.addr %s287, 2
          %s289 = smul.addr %s288, 8
          %s290 = scalar_lea.vmem %s0, %s289
        $region48: #{_lambda_.1} parent=43 // pred_fallthru
          _
        // Predicated region
        $region49: #{_lambda_.1} parent=43 // pred_check
          %p291 = pneg %p64
        $region50: #{_lambda_.1} parent=43 // pred_check_branch
          %293 = sbr.rel (%p291) target = $region52
        $region51: #{_lambda_.1} parent=43 // pred_region
          %p294 = scmp.lt.s32.totalorder %s18, 1
          %s295 = scalar_select %p294, %s18, 1
          %s296 = smul.addr %s295, 4
          %s297 = scalar_lea.vmem %s1, %s296
        $region52: #{_lambda_.1} parent=43 // pred_fallthru
          _
      $region44: #{_lambda_.1} parent=5 // pred_fallthru
        _
      %p298 = scmp.le.s32.totalorder 1, %s18
      %p299 = scmp.lt.s32.totalorder %s18, 3
      %p300 = pnand %p298, %p299
      %p301 = pneg %p300
      // Predicated region
      $region53: #{_lambda_.1} parent=5 // pred_check
        _
      $region54: #{_lambda_.1} parent=5 // pred_check_branch
        %303 = sbr.rel (%p300) target = $region56
      $region55: #{_lambda_.1} parent=5 // pred_region
        %s304 = ssub.s32 %s18, 1
        %p305 = scmp.lt.s32.totalorder %s23, 1
        %s306 = scalar_select %p305, %s23, 1
        %s307 = smul.addr %s306, 2
        %s308 = smul.addr %s307, 8
        %s309 = scalar_lea.vmem %s0, %s308
        %p310 = pneg %p44
        %p311 = pneg %p41
        %p312 = scmp.lt.s32.totalorder %s23, 1
        %s313 = scalar_select %p312, %s23, 1
        %s314 = smul.addr %s313, 4
        %s315 = scalar_lea.vmem %s1, %s314
        %p316 = pneg %p70
        %p317 = pneg %p67
        %p318 = pneg %p91
        %p319 = pneg %p88
        %p320 = pneg %p112
        %p321 = pneg %p109
        %p322 = pneg %p133
        %p323 = pneg %p130
        %p324 = pneg %p154
        %p325 = pneg %p151
        %p326 = pneg %p175
        %p327 = pneg %p172
        %p328 = pneg %p196
        %p329 = pneg %p193
        %p330 = pneg %p217
        %p331 = pneg %p214
        %p332 = pneg %p243
        %p333 = pneg %p240
        %s334 = sand.u32 %s230, 1
        %s335 = scalar_lea.sflag [#allocation3], %s334
        %s336 = sand.u32 %s230, 1
        %s337 = smul.addr %s336, 4
        %s338 = scalar_lea.vmem [#allocation2], %s337
        %p339 = scmp.lt.s32.totalorder %s23, 1
        %s340 = scalar_select %p339, %s23, 1
        %s341 = smul.addr %s340, 2
        %s342 = smul.addr %s341, 8
        %s343 = scalar_lea.vmem %s0, %s342
        %p344 = scmp.lt.s32.totalorder %s23, 1
        %s345 = scalar_select %p344, %s23, 1
        %s346 = smul.addr %s345, 4
        %s347 = scalar_lea.vmem %s1, %s346
        %v349 = vld [vmem:[%s343] sm:$0xff]
        %v350 = vld [vmem:[%s343 + $0x8] sm:$0xff]
        %v351 = vld [vmem:[%s347] sm:$0xf]
        %v352 = vpack.c.bf16 %v350, %v349
        %v353 = vld [vmem:[%s2] sm:$0xff]
        %v354 = vld [vmem:[%s2 + $0x8] sm:$0xff]
        %v355 = vld [vmem:[%s2 + $0x10] sm:$0xff]
        %v356 = vld [vmem:[%s2 + $0x18] sm:$0xff]
        %v357 = vld [vmem:[%s2 + $0x20] sm:$0xff]
        %v358 = vld [vmem:[%s2 + $0x28] sm:$0xff]
        %v359 = vld [vmem:[%s2 + $0x30] sm:$0xff]
        %v360 = vld [vmem:[%s2 + $0x38] sm:$0xff]
        %v361 = vpack.c.bf16 %v355, %v353
        %v362 = vpack.c.bf16 %v356, %v354
        %v363 = vpack.c.bf16 %v359, %v357
        %v364 = vpack.c.bf16 %v360, %v358
        %v365 = vld [vmem:[%s3] sm:$0x3]
        %v367 = vperm.slane %v365, 0
        %v368 = vperm.slane %v365, 1
        %vm371 = vcmask 261120
        %v373 = vsel %vm371, %v352, 0
        %375 = vmatpush.bf16.msra.mxu0 0
        %376 = vmatpush.bf16.msra.mxu0 0
        %377 = vmatpush.bf16.msra.mxu0 0
        %378 = vmatpush.bf16.msra.mxu0 0
        %379 = vmatpush.bf16.msra.mxu0 0
        %380 = vmatpush.bf16.msra.mxu0 0
        %381 = vmatpush.bf16.msra.mxu0 %v363
        %382 = vmatpush.bf16.msra.mxu0 %v361
        %383 = vmatmul.bf16.gmra.mxu0 %v373
        %v384 = vpop.f32.mrf.mxu0
        %v385 = vadd.f32 %v367, %v384
        %v386 = vpop.f32.mrf.mxu0
        %v387 = vadd.f32 %v367, %v386
        %388 = vdwg.mxu0
        %389 = vmatpush.bf16.msra.mxu0 0
        %390 = vmatpush.bf16.msra.mxu0 0
        %391 = vmatpush.bf16.msra.mxu0 0
        %392 = vmatpush.bf16.msra.mxu0 0
        %393 = vmatpush.bf16.msra.mxu0 0
        %394 = vmatpush.bf16.msra.mxu0 0
        %395 = vmatpush.bf16.msra.mxu0 %v364
        %396 = vmatpush.bf16.msra.mxu0 %v362
        %397 = vmatmul.bf16.gmra.mxu0 %v373
        %v398 = vpop.f32.mrf.mxu0
        %v399 = vadd.f32 %v368, %v398
        %v400 = vpop.f32.mrf.mxu0
        %v401 = vadd.f32 %v368, %v400
        %402 = vdwg.mxu0
        %v403 = vpack.c.bf16 %v351, %v351
        %v404 = vld [vmem:[%s4] sm:$0xff]
        %v405 = vld [vmem:[%s4 + $0x8] sm:$0xff]
        %v406 = vld [vmem:[%s4 + $0x10] sm:$0xff]
        %v407 = vld [vmem:[%s4 + $0x18] sm:$0xff]
        %v408 = vpack.c.bf16 %v405, %v404
        %v409 = vpack.c.bf16 %v407, %v406
        %v410 = vld [vmem:[%s5] sm:$0x1]
        %v412 = vperm.slane %v410, 0
        %v415 = vsel %vm371, %v403, 0
        %417 = vmatpush.bf16.msra.mxu0 0
        %418 = vmatpush.bf16.msra.mxu0 0
        %419 = vmatpush.bf16.msra.mxu0 0
        %420 = vmatpush.bf16.msra.mxu0 0
        %421 = vmatpush.bf16.msra.mxu0 0
        %422 = vmatpush.bf16.msra.mxu0 0
        %423 = vmatpush.bf16.msra.mxu0 %v409
        %424 = vmatpush.bf16.msra.mxu0 %v408
        %425 = vmatmul.bf16.gmra.mxu0 %v415
        %v426 = vpop.f32.mrf.mxu0
        %v427 = vadd.f32 %v412, %v426
        %v428 = vpop.f32.mrf.mxu0
        %429 = vdwg.mxu0
        %v430 = vld [vmem:[%s6] sm:$0xf]
        %v431 = vld [vmem:[%s6 + $0x4] sm:$0xf]
        %v432 = vld [vmem:[%s6 + $0x8] sm:$0xf]
        %v433 = vld [vmem:[%s6 + $0xc] sm:$0xf]
        %v434 = vpack.c.bf16 %v427, %v427
        %v435 = vpack.c.bf16 %v387, %v385
        %vm436 = vcmask 130048
        %v438 = vsel %vm436, %v434, 0
        %v441 = vsel %vm436, %v435, 0
        %443 = vmatpush.bf16.xpose.msra.mxu0 0
        %444 = vmatpush.bf16.xpose.msra.mxu0 0
        %445 = vmatpush.bf16.xpose.msra.mxu0 0
        %446 = vmatpush.bf16.xpose.msra.mxu0 0
        %447 = vmatpush.bf16.xpose.msra.mxu0 0
        %448 = vmatpush.bf16.xpose.msra.mxu0 0
        %449 = vmatpush.bf16.xpose.msra.mxu0 0
        %450 = vmatpush.bf16.xpose.msra.mxu0 %v441
        %451 = vmatmul.bf16.gmra.mxu0 %v438
        %v452 = vpop.f32.mrf.mxu0
        %v453 = vadd.f32 0.0, %v452
        %v454 = vpop.f32.mrf.mxu0
        %455 = vdwg.mxu0
        %v456 = vmul.f32 %v453, 0.25
        %v457 = vadd.f32 %v456, %v430
        %vm458 = vcmask 125952
        %v459 = vsel %vm458, %v457, -inf
        %460 = vmax.xlane.f32.xlu0 %v459
        %v461 = vpop.xlane.xlu0 %460
        %v462 = vsub.f32 %v457, %v461
        %v463 = vmul.f32 %v462, 1.442695
        %v464 = vpow.pop %v463
        %v465 = vsel %vm458, %v464, 0.0
        %466 = vadd.xlane.f32.xlu0 %v465
        %v467 = vpop.xlane.xlu0 %466
        %v468 = vrcp.pop %v467
        %v469 = vmul.f32 %v464, %v468
        %v470 = vpack.c.bf16 %v469, %v469
        %472 = vrot.lane.b32.xlu0 %v435, 112
        %v473 = vpop.permute.xlu0 %472
        %v476 = vsel %vm436, %v470, 0
        %478 = vmatpush.bf16.msra.mxu0 0
        %479 = vmatpush.bf16.msra.mxu0 0
        %480 = vmatpush.bf16.msra.mxu0 0
        %481 = vmatpush.bf16.msra.mxu0 0
        %482 = vmatpush.bf16.msra.mxu0 0
        %483 = vmatpush.bf16.msra.mxu0 0
        %484 = vmatpush.bf16.msra.mxu0 0
        %485 = vmatpush.bf16.msra.mxu0 %v473
        %486 = vmatmul.bf16.gmra.mxu0 %v476
        %v487 = vpop.f32.mrf.mxu0
        %v488 = vadd.f32 0.0, %v487
        %v489 = vpop.f32.mrf.mxu0
        %490 = vdwg.mxu0
        %492 = vrot.lane.b32.xlu0 %v434, 112
        %v493 = vpop.permute.xlu0 %492
        %494 = vrot.lane.b32.xlu0 %v435, 80
        %v495 = vpop.permute.xlu0 %494
        %v497 = vsel %vm436, %v493, 0
        %v500 = vsel %vm436, %v495, 0
        %502 = vmatpush.bf16.xpose.msra.mxu0 0
        %503 = vmatpush.bf16.xpose.msra.mxu0 0
        %504 = vmatpush.bf16.xpose.msra.mxu0 0
        %505 = vmatpush.bf16.xpose.msra.mxu0 0
        %506 = vmatpush.bf16.xpose.msra.mxu0 0
        %507 = vmatpush.bf16.xpose.msra.mxu0 0
        %508 = vmatpush.bf16.xpose.msra.mxu0 0
        %509 = vmatpush.bf16.xpose.msra.mxu0 %v500
        %510 = vmatmul.bf16.gmra.mxu0 %v497
        %v511 = vpop.f32.mrf.mxu0
        %v512 = vadd.f32 0.0, %v511
        %v513 = vpop.f32.mrf.mxu0
        %514 = vdwg.mxu0
        %v515 = vmul.f32 %v512, 0.25
        %v516 = vadd.f32 %v515, %v431
        %v517 = vsel %vm458, %v516, -inf
        %518 = vmax.xlane.f32.xlu0 %v517
        %v519 = vpop.xlane.xlu0 %518
        %v520 = vsub.f32 %v516, %v519
        %v521 = vmul.f32 %v520, 1.442695
        %v522 = vpow.pop %v521
        %v523 = vsel %vm458, %v522, 0.0
        %524 = vadd.xlane.f32.xlu0 %v523
        %v525 = vpop.xlane.xlu0 %524
        %v526 = vrcp.pop %v525
        %v527 = vmul.f32 %v522, %v526
        %v528 = vpack.c.bf16 %v527, %v527
        %529 = vrot.lane.b32.xlu0 %v435, 64
        %v530 = vpop.permute.xlu0 %529
        %v533 = vsel %vm436, %v528, 0
        %535 = vmatpush.bf16.msra.mxu0 0
        %536 = vmatpush.bf16.msra.mxu0 0
        %537 = vmatpush.bf16.msra.mxu0 0
        %538 = vmatpush.bf16.msra.mxu0 0
        %539 = vmatpush.bf16.msra.mxu0 0
        %540 = vmatpush.bf16.msra.mxu0 0
        %541 = vmatpush.bf16.msra.mxu0 0
        %542 = vmatpush.bf16.msra.mxu0 %v530
        %543 = vmatmul.bf16.gmra.mxu0 %v533
        %v544 = vpop.f32.mrf.mxu0
        %v545 = vadd.f32 0.0, %v544
        %v546 = vpop.f32.mrf.mxu0
        %547 = vdwg.mxu0
        %548 = vrot.lane.b32.xlu0 %v434, 96
        %v549 = vpop.permute.xlu0 %548
        %550 = vrot.lane.b32.xlu0 %v435, 32
        %v551 = vpop.permute.xlu0 %550
        %v553 = vsel %vm436, %v549, 0
        %v556 = vsel %vm436, %v551, 0
        %558 = vmatpush.bf16.xpose.msra.mxu0 0
        %559 = vmatpush.bf16.xpose.msra.mxu0 0
        %560 = vmatpush.bf16.xpose.msra.mxu0 0
        %561 = vmatpush.bf16.xpose.msra.mxu0 0
        %562 = vmatpush.bf16.xpose.msra.mxu0 0
        %563 = vmatpush.bf16.xpose.msra.mxu0 0
        %564 = vmatpush.bf16.xpose.msra.mxu0 0
        %565 = vmatpush.bf16.xpose.msra.mxu0 %v556
        %566 = vmatmul.bf16.gmra.mxu0 %v553
        %v567 = vpop.f32.mrf.mxu0
        %v568 = vadd.f32 0.0, %v567
        %v569 = vpop.f32.mrf.mxu0
        %570 = vdwg.mxu0
        %v571 = vmul.f32 %v568, 0.25
        %v572 = vadd.f32 %v571, %v432
        %v573 = vsel %vm458, %v572, -inf
        %574 = vmax.xlane.f32.xlu0 %v573
        %v575 = vpop.xlane.xlu0 %574
        %v576 = vsub.f32 %v572, %v575
        %v577 = vmul.f32 %v576, 1.442695
        %v578 = vpow.pop %v577
        %v579 = vsel %vm458, %v578, 0.0
        %580 = vadd.xlane.f32.xlu0 %v579
        %v581 = vpop.xlane.xlu0 %580
        %v582 = vrcp.pop %v581
        %v583 = vmul.f32 %v578, %v582
        %v584 = vpack.c.bf16 %v583, %v583
        %v585 = vpack.c.bf16 %v401, %v399
        %587 = vrot.lane.b32.xlu0 %v435, 16
        %v588 = vpop.permute.xlu0 %587
        %589 = vrot.lane.b32.xlu0 %v585, 16
        %v590 = vpop.permute.xlu0 %589
        %vm591 = vcmask 130048
        %v592 = vsel %vm591, %v588, %v590
        %v595 = vsel %vm436, %v584, 0
        %597 = vmatpush.bf16.msra.mxu0 0
        %598 = vmatpush.bf16.msra.mxu0 0
        %599 = vmatpush.bf16.msra.mxu0 0
        %600 = vmatpush.bf16.msra.mxu0 0
        %601 = vmatpush.bf16.msra.mxu0 0
        %602 = vmatpush.bf16.msra.mxu0 0
        %603 = vmatpush.bf16.msra.mxu0 0
        %604 = vmatpush.bf16.msra.mxu0 %v592
        %605 = vmatmul.bf16.gmra.mxu0 %v595
        %v606 = vpop.f32.mrf.mxu0
        %v607 = vadd.f32 0.0, %v606
        %v608 = vpop.f32.mrf.mxu0
        %609 = vdwg.mxu0
        %610 = vrot.lane.b32.xlu0 %v434, 80
        %v611 = vpop.permute.xlu0 %610
        %612 = vrot.lane.b32.xlu0 %v585, 112
        %v613 = vpop.permute.xlu0 %612
        %v615 = vsel %vm436, %v611, 0
        %v618 = vsel %vm436, %v613, 0
        %620 = vmatpush.bf16.xpose.msra.mxu0 0
        %621 = vmatpush.bf16.xpose.msra.mxu0 0
        %622 = vmatpush.bf16.xpose.msra.mxu0 0
        %623 = vmatpush.bf16.xpose.msra.mxu0 0
        %624 = vmatpush.bf16.xpose.msra.mxu0 0
        %625 = vmatpush.bf16.xpose.msra.mxu0 0
        %626 = vmatpush.bf16.xpose.msra.mxu0 0
        %627 = vmatpush.bf16.xpose.msra.mxu0 %v618
        %628 = vmatmul.bf16.gmra.mxu0 %v615
        %v629 = vpop.f32.mrf.mxu0
        %v630 = vadd.f32 0.0, %v629
        %v631 = vpop.f32.mrf.mxu0
        %632 = vdwg.mxu0
        %v633 = vmul.f32 %v630, 0.25
        %v634 = vadd.f32 %v633, %v433
        %v635 = vsel %vm458, %v634, -inf
        %636 = vmax.xlane.f32.xlu0 %v635
        %v637 = vpop.xlane.xlu0 %636
        %v638 = vsub.f32 %v634, %v637
        %v639 = vmul.f32 %v638, 1.442695
        %v640 = vpow.pop %v639
        %v641 = vsel %vm458, %v640, 0.0
        %642 = vadd.xlane.f32.xlu0 %v641
        %v643 = vpop.xlane.xlu0 %642
        %v644 = vrcp.pop %v643
        %v645 = vmul.f32 %v640, %v644
        %v646 = vpack.c.bf16 %v645, %v645
        %647 = vrot.lane.b32.xlu0 %v585, 96
        %v648 = vpop.permute.xlu0 %647
        %v651 = vsel %vm436, %v646, 0
        %653 = vmatpush.bf16.msra.mxu0 0
        %654 = vmatpush.bf16.msra.mxu0 0
        %655 = vmatpush.bf16.msra.mxu0 0
        %656 = vmatpush.bf16.msra.mxu0 0
        %657 = vmatpush.bf16.msra.mxu0 0
        %658 = vmatpush.bf16.msra.mxu0 0
        %659 = vmatpush.bf16.msra.mxu0 0
        %660 = vmatpush.bf16.msra.mxu0 %v648
        %661 = vmatmul.bf16.gmra.mxu0 %v651
        %v662 = vpop.f32.mrf.mxu0
        %v663 = vadd.f32 0.0, %v662
        %v664 = vpop.f32.mrf.mxu0
        %665 = vdwg.mxu0
        %667 = vrot.lane.b32.xlu0 %v545, 32
        %v668 = vpop.permute.xlu0 %667
        %671 = vrot.lane.b32.xlu0 %v607, 64
        %v672 = vpop.permute.xlu0 %671
        %675 = vrot.lane.b32.xlu0 %v663, 96
        %v676 = vpop.permute.xlu0 %675
        %v678 = vsel %vm371, %v488, %v668
        %vm679 = vcmask 523264
        %v680 = vsel %vm679, %v678, %v672
        %vm681 = vcmask 785408
        %v682 = vsel %vm681, %v680, %v676
        %v683 = vadd.f32 %v682, 3.0
        %v684 = vmax.f32 %v683, 0.0
        %v685 = vmin.f32 %v684, 6.0
        %v686 = vmul.f32 %v682, %v685
        %v687 = vmul.f32 %v686, 0.16666667
        %v688 = vpack.c.bf16 %v687, %v687
        %v689 = vld [vmem:[%s7] sm:$0xff]
        %v690 = vld [vmem:[%s7 + $0x8] sm:$0xff]
        %v691 = vld [vmem:[%s7 + $0x10] sm:$0xff]
        %v692 = vld [vmem:[%s7 + $0x18] sm:$0xff]
        %v693 = vld [vmem:[%s7 + $0x20] sm:$0xff]
        %v694 = vld [vmem:[%s7 + $0x28] sm:$0xff]
        %v695 = vld [vmem:[%s7 + $0x30] sm:$0xff]
        %v696 = vld [vmem:[%s7 + $0x38] sm:$0xff]
        %v697 = vld [vmem:[%s7 + $0x40] sm:$0xff]
        %v698 = vld [vmem:[%s7 + $0x48] sm:$0xff]
        %v699 = vld [vmem:[%s7 + $0x50] sm:$0xff]
        %v700 = vld [vmem:[%s7 + $0x58] sm:$0xff]
        %v701 = vld [vmem:[%s7 + $0x60] sm:$0xff]
        %v702 = vld [vmem:[%s7 + $0x68] sm:$0xff]
        %v703 = vld [vmem:[%s7 + $0x70] sm:$0xff]
        %v704 = vld [vmem:[%s7 + $0x78] sm:$0xff]
        %v705 = vpack.c.bf16 %v690, %v689
        %v706 = vpack.c.bf16 %v692, %v691
        %v707 = vpack.c.bf16 %v694, %v693
        %v708 = vpack.c.bf16 %v696, %v695
        %v709 = vpack.c.bf16 %v698, %v697
        %v710 = vpack.c.bf16 %v700, %v699
        %v711 = vpack.c.bf16 %v702, %v701
        %v712 = vpack.c.bf16 %v704, %v703
        %v713 = vld [vmem:[%s8] sm:$0x1]
        %v715 = vperm.slane %v713, 0
        %717 = vmatpush.bf16.msra.mxu0 %v712
        %718 = vmatpush.bf16.msra.mxu0 %v711
        %719 = vmatpush.bf16.msra.mxu0 %v710
        %720 = vmatpush.bf16.msra.mxu0 %v709
        %721 = vmatpush.bf16.msra.mxu0 %v708
        %722 = vmatpush.bf16.msra.mxu0 %v707
        %723 = vmatpush.bf16.msra.mxu0 %v706
        %724 = vmatpush.bf16.msra.mxu0 %v705
        %725 = vmatmul.bf16.gmra.mxu0 %v688
        %v726 = vpop.f32.mrf.mxu0
        %v727 = vadd.f32 %v715, %v726
        %v728 = vpop.f32.mrf.mxu0
        %729 = vdwg.mxu0
        %vm730 = vcmask 257024
        %731 = vst.msk [vmem:[%s338] sm:$0xf] %vm730, %v727
        %s732 = sand.u32 %s230, 1
        %s733 = scalar_lea.sflag [#allocation3], %s732
        %s734 = sand.u32 %s230, 1
        %s735 = smul.addr %s734, 4
        %s736 = scalar_lea.vmem [#allocation2], %s735
        // Predicated region
        $region57: #{_lambda_.1} parent=55 // pred_check
          %p737 = pneg %p240
        $region58: #{_lambda_.1} parent=55 // pred_check_branch
          %739 = sbr.rel (%p737) target = $region60
        $region59: #{_lambda_.1} parent=55 // pred_region
          %741 = vsyncadd %s733, 0
          %s742 = smul.addr %s23, 4
          %s743 = scalar_lea.hbm %s9, %s742
          %s745 = sshll.u32 %s736, 4
          %s746 = int_to_ptr.vmem [resolvable:$true] %s745
          %s747 = sshll.u32 %s743, 4
          %s748 = int_to_ptr.hbm [resolvable:$true] %s747
          %750 = dma.vmem_to_hbm [thread:$0]  %s746, 64, %s748, %s733
        $region60: #{_lambda_.1} parent=55 // pred_fallthru
          _
      $region56: #{_lambda_.1} parent=5 // pred_fallthru
        _
      %p751 = scmp.le.s32.totalorder 2, %s18
      // Predicated region
      $region61: #{_lambda_.1} parent=5 // pred_check
        %p752 = pneg %p751
      $region62: #{_lambda_.1} parent=5 // pred_check_branch
        %754 = sbr.rel (%p752) target = $region64
      $region63: #{_lambda_.1} parent=5 // pred_region
        %s755 = ssub.s32 %s18, 2
        // Predicated region
        $region65: #{_lambda_.1} parent=63 // pred_check
          %p756 = pneg %p246
        $region66: #{_lambda_.1} parent=63 // pred_check_branch
          %758 = sbr.rel (%p756) target = $region68
        $region67: #{_lambda_.1} parent=63 // pred_region
          %s759 = sand.u32 %s231, 1
          %s760 = scalar_lea.sflag [#allocation3], %s759
          %s761 = sand.u32 %s231, 1
          %s762 = smul.addr %s761, 4
          %s763 = scalar_lea.vmem [#allocation2], %s762
          %765 = dma.done %s760, 64
        $region68: #{_lambda_.1} parent=63 // pred_fallthru
          _
      $region64: #{_lambda_.1} parent=5 // pred_fallthru
        _
    $region6: #{_lambda_.1} parent=1 // loop_footer
      %s22 = sadd.s32 1, %s18
    $region7: #{_lambda_.1} parent=1 // loop_footer_branch
      %17 = sbr.rel target = $region3
    $region8: #{_lambda_.1} parent=1 // loop_exit
      _
    %766 = vsyncpa [#allocation3], 1
    %s767 = scalar_lea.sflag [#allocation3], 1
    %768 = vsyncpa %s767, 1

</llo_original>
